<compile_context>
chip_gen: v6e
topology: v6e:2x2x1
jax: 0.10.0
libtpu: 0.0.40
codegen_flags: <defaults>
</compile_context>

<pallas_src>
import jax
import jax.numpy as jnp
from jax.experimental import pallas as pl
from jax.experimental.pallas import tpu as pltpu


def _round_up(x, m):
    return (x + m - 1) // m * m


def _cat_encoder_kernel(ids_ref, tbl_ref, b_ref, o_ref):
    # ids_ref: (TB, 1) int32   tbl_ref: (C, N) bf16 (fused Embedding@W^T)
    # b_ref:   (1, N)  f32     o_ref:   (TB, N) out dtype
    ids = ids_ref[...]                                    # (TB, 1) int32
    tb = ids.shape[0]
    C = tbl_ref.shape[0]

    # Embedding-row selection as a one-hot matmul on the MXU (exact: exactly
    # one 1.0 per row, f32 accumulation).
    cat_iota = jax.lax.broadcasted_iota(jnp.int32, (tb, C), 1)
    onehot = (cat_iota == ids).astype(jnp.bfloat16)       # (TB, C) bf16

    y = jnp.dot(onehot, tbl_ref[...],
                preferred_element_type=jnp.float32)       # (TB, N) f32

    # Epilogue in f32: bias broadcast over the batch tile + ReLU.
    y = y + b_ref[...]
    o_ref[...] = jnp.maximum(y, 0.0).astype(o_ref.dtype)


def category_encoder_forward(element, fused_table_bf16, bias_row_f32,
                             *, tile_b=256, out_dtype=jnp.float32):
    """relu(onehot(element) @ fused_table + bias)  ==  relu(Linear(Embedding(element))).

    element:          (B,)   int  category ids
    fused_table_bf16: (C, N) bf16 precomputed embedding @ W^T
    bias_row_f32:     (1, N) f32  Linear bias
    returns:          (B, N) out_dtype
    """
    B = element.shape[0]
    C, N = fused_table_bf16.shape

    ids = element.astype(jnp.int32).reshape(B, 1)

    # Large tiles for MXU utilization (256 for v6e/v7x 2x256^2 MXU), but keep
    # the batch grid at >= 2 steps so v7x's two TensorCores both get work.
    tile_b = max(8, min(tile_b, _round_up(pl.cdiv(max(B, 1), 2), 8)))
    grid_b = pl.cdiv(B, tile_b)

    out_bytes = jnp.dtype(out_dtype).itemsize
    flops = 2 * B * C * N
    bytes_accessed = (B * 4              # ids
                      + C * N * 2        # fused table (bf16), grid-invariant
                      + N * 4            # bias
                      + B * N * out_bytes)  # output

    # VMEM: single-buffered fused table + bias, double-buffered ids/out tiles.
    vmem_needed = (C * N * 2 + N * 4
                   + 2 * tile_b * 4
                   + 2 * tile_b * N * out_bytes)
    vmem_limit = min(128 << 20, max(32 << 20, 2 * vmem_needed + (8 << 20)))

    return pl.pallas_call(
        _cat_encoder_kernel,
        out_shape=jax.ShapeDtypeStruct((B, N), out_dtype),
        grid_spec=pltpu.PrefetchScalarGridSpec(
            num_scalar_prefetch=0,
            grid=(grid_b,),
            in_specs=[
                pl.BlockSpec((tile_b, 1), lambda i: (i, 0)),      # ids tile
                pl.BlockSpec((C, N), lambda i: (0, 0),
                             pipeline_mode=pl.Buffered(1)),       # fused table
                pl.BlockSpec((1, N), lambda i: (0, 0),
                             pipeline_mode=pl.Buffered(1)),       # bias row
            ],
            out_specs=pl.BlockSpec((tile_b, N), lambda i: (i, 0)),
        ),
        compiler_params=pltpu.CompilerParams(
            dimension_semantics=("parallel",),
            vmem_limit_bytes=vmem_limit,
        ),
        cost_estimate=pl.CostEstimate(
            flops=flops, transcendentals=0, bytes_accessed=bytes_accessed),
    )(ids, fused_table_bf16, bias_row_f32)


class CategoryEncoderPallas:
    """JAX/Pallas equivalent of the PyTorch CategoryEncoder."""

    def __init__(self, key, num_categories, embed_dim, linear_input_dim,
                 linear_output_dim):
        assert embed_dim == linear_input_dim
        k_emb, k_w, k_b = jax.random.split(key, 3)
        # nn.Embedding default init ~ N(0,1); nn.Linear ~ U(-1/sqrt(in), 1/sqrt(in))
        self.embedding = jax.random.normal(
            k_emb, (num_categories, embed_dim), dtype=jnp.float32)
        bound = 1.0 / (linear_input_dim ** 0.5)
        self.weight = jax.random.uniform(
            k_w, (linear_output_dim, linear_input_dim),
            minval=-bound, maxval=bound, dtype=jnp.float32)
        self.bias = jax.random.uniform(
            k_b, (linear_output_dim,),
            minval=-bound, maxval=bound, dtype=jnp.float32)

        # Offline fusion of the two linear maps (exact up to one bf16 rounding):
        # fused[c, :] = Linear.weight @ embedding[c]  (without bias).
        fused = self.embedding @ self.weight.T                 # (C, N) f32
        self.fused_table_bf16 = fused.astype(jnp.bfloat16)     # kernel operand
        self.bias_row = self.bias.reshape(1, -1)                # (1, N) f32

    def __call__(self, element):
        # element: int category ids, shape (B,)
        return category_encoder_forward(
            element, self.fused_table_bf16, self.bias_row)


if __name__ == "__main__":
    key = jax.random.PRNGKey(0)
    k_params, k_ids = jax.random.split(key)

    B = 200              # not a multiple of tile_b -> exercises masked last block
    num_categories = 32
    embed_dim = 128      # linear_input_dim
    out_dim = 128        # linear_output_dim

    enc = CategoryEncoderPallas(
        k_params, num_categories, embed_dim, embed_dim, out_dim)

    element = jax.random.randint(
        k_ids, (B,), 0, num_categories, dtype=jnp.int32)

    out = jax.block_until_ready(enc(element))

    # Reference in plain JAX using the same bf16-rounded fused table the kernel
    # sees (one-hot selection + f32 bias/ReLU are exact), so any mismatch
    # indicates a kernel bug.
    fused_ref = (enc.embedding @ enc.weight.T).astype(jnp.bfloat16).astype(jnp.float32)
    ref = jnp.maximum(fused_ref[element] + enc.bias, 0.0)

    assert out.shape == (B, out_dim)
    assert jnp.allclose(out, ref, atol=1e-2, rtol=1e-2)

    print("KERNEL_OK")
</pallas_src>

<mosaic_0001>
module attributes {stable_mosaic.version = 11 : i64} {
  func.func @_cat_encoder_kernel(%arg0: i32, %arg1: memref<104x1xi32, #tpu.memory_space<vmem>>, %arg2: memref<32x128xbf16, #tpu.memory_space<vmem>>, %arg3: memref<1x128xf32, #tpu.memory_space<vmem>>, %arg4: memref<104x128xf32, #tpu.memory_space<vmem>>) attributes {dimension_semantics = [#tpu.dimension_semantics<parallel>], iteration_bounds = array<i64: 2>, scalar_prefetch = 0 : i64, scratch_operands = 0 : i64, tpu.core_type = #tpu.core_type<tc>, window_params = [{transform_indices = @transform_0, window_bounds = array<i64: 104, 1>}, {pipeline_mode = #tpu.pipeline_mode<synchronous>, transform_indices = @transform_1, window_bounds = array<i64: 32, 128>}, {pipeline_mode = #tpu.pipeline_mode<synchronous>, transform_indices = @transform_2, window_bounds = array<i64: 1, 128>}, {transform_indices = @transform_3, window_bounds = array<i64: 104, 128>}]} {
    %c0 = arith.constant 0 : index
    %c0_0 = arith.constant 0 : index
    %0 = vector.load %arg1[%c0, %c0_0] : memref<104x1xi32, #tpu.memory_space<vmem>>, vector<104x1xi32>
    %1 = tpu.iota {dimensions = array<i32: 1>} : vector<104x32xi32>
    %2 = vector.broadcast %0 : vector<104x1xi32> to vector<104x32xi32>
    %3 = arith.cmpi eq, %1, %2 : vector<104x32xi32>
    %4 = arith.extui %3 : vector<104x32xi1> to vector<104x32xi32>
    %5 = arith.sitofp %4 : vector<104x32xi32> to vector<104x32xf32>
    %6 = arith.truncf %5 : vector<104x32xf32> to vector<104x32xbf16>
    %c0_1 = arith.constant 0 : index
    %c0_2 = arith.constant 0 : index
    %7 = vector.load %arg2[%c0_1, %c0_2] : memref<32x128xbf16, #tpu.memory_space<vmem>>, vector<32x128xbf16>
    %cst = arith.constant dense<0.000000e+00> : vector<104x128xf32>
    %8 = tpu.matmul %6, %7, %cst {dimension_numbers = #tpu.dot_dimension_numbers<[1], [0], [0], [1], [0, 0, 1, 1], [], []>} : vector<104x32xbf16>, vector<32x128xbf16>, vector<104x128xf32> -> vector<104x128xf32>
    %c0_3 = arith.constant 0 : index
    %c0_4 = arith.constant 0 : index
    %9 = vector.load %arg3[%c0_3, %c0_4] : memref<1x128xf32, #tpu.memory_space<vmem>>, vector<1x128xf32>
    %10 = vector.broadcast %9 : vector<1x128xf32> to vector<104x128xf32>
    %11 = arith.addf %8, %10 : vector<104x128xf32>
    %cst_5 = arith.constant 0.000000e+00 : f32
    %12 = vector.broadcast %cst_5 : f32 to vector<104x128xf32>
    %13 = arith.maximumf %11, %12 : vector<104x128xf32>
    %c0_6 = arith.constant 0 : index
    %c0_7 = arith.constant 0 : index
    %14 = vector.load %arg4[%c0_6, %c0_7] : memref<104x128xf32, #tpu.memory_space<vmem>>, vector<104x128xf32>
    tpu.vector_store %arg4[%c0_6, %c0_7], %13 {strides = array<i32>} : memref<104x128xf32, #tpu.memory_space<vmem>>, vector<104x128xf32>,
    return
  }
  func.func @transform_0(%arg0: i32) -> (i32, i32) {
    %c0_i32 = arith.constant 0 : i32
    %c0_i32_0 = arith.constant 0 : i32
    return %arg0, %c0_i32 : i32, i32
  }
  func.func @transform_1(%arg0: i32) -> (i32, i32) {
    %c0_i32 = arith.constant 0 : i32
    %c0_i32_0 = arith.constant 0 : i32
    %c0_i32_1 = arith.constant 0 : i32
    return %c0_i32, %c0_i32_0 : i32, i32
  }
  func.func @transform_2(%arg0: i32) -> (i32, i32) {
    %c0_i32 = arith.constant 0 : i32
    %c0_i32_0 = arith.constant 0 : i32
    %c0_i32_1 = arith.constant 0 : i32
    return %c0_i32, %c0_i32_0 : i32, i32
  }
  func.func @transform_3(%arg0: i32) -> (i32, i32) {
    %c0_i32 = arith.constant 0 : i32
    %c0_i32_0 = arith.constant 0 : i32
    return %arg0, %c0_i32 : i32, i32
  }
}

</mosaic_0001>

<llo_original>
// kernel: tpu_custom_call.1
$region0: #{tpu_custom_call.1}
  #allocation0 [shape = 'u32[]', space=smem, size = 0x4, offset = 0x4, fixed_abs, tag = 'smem constant byte address 0x4 - core index']
  #allocation1 [shape = 'u32[144,128]{1,0:T(1,128)}', space=vmem, size = 0x12000, scoped, tag = 'internal scratch']
  %s0 = inlined_call_operand.vmem [shape: s32[200,1], index: 0, kind: input, shape index: {}]
  %s1 = inlined_call_operand.vmem [shape: bf16[32,128], index: 1, kind: input, shape index: {}]
  %s2 = inlined_call_operand.vmem [shape: f32[1,128], index: 2, kind: input, shape index: {}]
  %s3 = inlined_call_operand.hbm [shape: f32[200,128], index: 3, kind: output, shape index: {}]
  %s4 = sld [smem:[#allocation0]]
  $region45: #{tpu_custom_call.1} parent=0
    _
  %s6 = ssub.s32 1, %s4
  %s7 = scalar_select 0, %s6, %s4
  $region1: #{tpu_custom_call.1} parent=0
    #allocation2 [shape = 'u8[106496]{0}', space=vmem, size = 0x1a000, scoped, tag = 'output window, operand 0']
    #allocation3 [shape = 's32[2]{0}', space=sflag, size = 0x8, scoped, tag = 'scoped memory for tpu_custom_call.1']
    %8 = vsyncpa [#allocation3], 0
    %s9 = scalar_lea.sflag [#allocation3], 1
    %10 = vsyncpa %s9, 0
    loop: start=0, step=1, limit=4
    $region2: #{tpu_custom_call.1} parent=1 // loop_pre_header
      _
    $region3: #{tpu_custom_call.1} parent=1 // loop_header
      %s12 = sphi 0, %s16
      %p13 = scmp.ge.s32.totalorder %s12, 4
      %s22 = sphi 0, %s24
      %s25 = sphi 0, %s22
      %s26 = sphi 0, %s25
      %s42 = sphi 0, %s26
      %s46 = sphi 0, %s46
      %s48 = sphi 0, %s46
      %s49 = sphi 0, %s48
      %s63 = sphi 0, %s49
      %s67 = sphi 0, %s67
      %s69 = sphi 0, %s67
      %s70 = sphi 0, %s69
      %s84 = sphi 0, %s70
      %s90 = sphi 0, %s92
      %s93 = sphi 0, %s90
      %s94 = sphi 0, %s93
      %s110 = sphi 0, %s94
    $region4: #{tpu_custom_call.1} parent=1 // loop_header_branch
      %15 = sbr.rel (%p13) target = $region8
    $region5: #{tpu_custom_call.1} parent=1 // loop_body
      %s17 = ssub.s32 %s12, 1
      %s18 = ssub.s32 %s12, 2
      %s19 = sadd.s32 %s12, 1
      %s20 = ssub.s32 %s12, %s19
      %p21 = scmp.eq.s32.totalorder %s20, 0
      %s23 = sadd.s32 %s22, 1
      %s24 = scalar_select %p21, %s22, %s23
      %p27 = pneg %p21
      %p28 = scmp.eq.s32.totalorder %s12, 1
      %p29 = por %p27, %p28
      %p30 = scmp.ne.s32.totalorder %s22, %s25
      %p31 = scmp.eq.s32.totalorder %s12, 0
      %p32 = por %p30, %p31
      %p33 = scmp.ne.s32.totalorder %s22, %s25
      %p34 = scmp.eq.s32.totalorder %s17, 1
      %p35 = por %p33, %p34
      %p36 = scmp.ne.s32.totalorder %s25, %s26
      %p37 = scmp.eq.s32.totalorder %s17, 0
      %p38 = por %p36, %p37
      %p39 = scmp.ne.s32.totalorder %s25, %s26
      %p40 = scmp.eq.s32.totalorder %s18, 1
      %p41 = por %p39, %p40
      %p43 = scmp.ne.s32.totalorder %s26, %s42
      %p44 = scmp.eq.s32.totalorder %s18, 0
      %p45 = por %p43, %p44
      %s47 = sadd.s32 %s46, 1
      %p50 = scmp.eq.s32.totalorder %s12, 1
      %p51 = scmp.ne.s32.totalorder %s46, %s48
      %p52 = scmp.eq.s32.totalorder %s12, 0
      %p53 = por %p51, %p52
      %p54 = scmp.ne.s32.totalorder %s46, %s48
      %p55 = scmp.eq.s32.totalorder %s17, 1
      %p56 = por %p54, %p55
      %p57 = scmp.ne.s32.totalorder %s48, %s49
      %p58 = scmp.eq.s32.totalorder %s17, 0
      %p59 = por %p57, %p58
      %p60 = scmp.ne.s32.totalorder %s48, %s49
      %p61 = scmp.eq.s32.totalorder %s18, 1
      %p62 = por %p60, %p61
      %p64 = scmp.ne.s32.totalorder %s49, %s63
      %p65 = scmp.eq.s32.totalorder %s18, 0
      %p66 = por %p64, %p65
      %s68 = sadd.s32 %s67, 1
      %p71 = scmp.eq.s32.totalorder %s12, 1
      %p72 = scmp.ne.s32.totalorder %s67, %s69
      %p73 = scmp.eq.s32.totalorder %s12, 0
      %p74 = por %p72, %p73
      %p75 = scmp.ne.s32.totalorder %s67, %s69
      %p76 = scmp.eq.s32.totalorder %s17, 1
      %p77 = por %p75, %p76
      %p78 = scmp.ne.s32.totalorder %s69, %s70
      %p79 = scmp.eq.s32.totalorder %s17, 0
      %p80 = por %p78, %p79
      %p81 = scmp.ne.s32.totalorder %s69, %s70
      %p82 = scmp.eq.s32.totalorder %s18, 1
      %p83 = por %p81, %p82
      %p85 = scmp.ne.s32.totalorder %s70, %s84
      %p86 = scmp.eq.s32.totalorder %s18, 0
      %p87 = por %p85, %p86
      %s88 = ssub.s32 %s12, %s19
      %p89 = scmp.eq.s32.totalorder %s88, 0
      %s91 = sadd.s32 %s90, 1
      %s92 = scalar_select %p89, %s90, %s91
      %p95 = pneg %p89
      %p96 = scmp.eq.s32.totalorder %s12, 1
      %p97 = por %p95, %p96
      %p98 = scmp.ne.s32.totalorder %s90, %s93
      %p99 = scmp.eq.s32.totalorder %s12, 0
      %p100 = por %p98, %p99
      %p101 = scmp.ne.s32.totalorder %s90, %s93
      %p102 = scmp.eq.s32.totalorder %s17, 1
      %p103 = por %p101, %p102
      %p104 = scmp.ne.s32.totalorder %s93, %s94
      %p105 = scmp.eq.s32.totalorder %s17, 0
      %p106 = por %p104, %p105
      %p107 = scmp.ne.s32.totalorder %s93, %s94
      %p108 = scmp.eq.s32.totalorder %s18, 1
      %p109 = por %p107, %p108
      %p111 = scmp.ne.s32.totalorder %s94, %s110
      %p112 = scmp.eq.s32.totalorder %s18, 0
      %p113 = por %p111, %p112
      %p114 = scmp.le.s32.totalorder 1, %s12
      %p115 = scmp.lt.s32.totalorder %s12, 3
      %p116 = pnand %p114, %p115
      %p117 = pneg %p116
      // Predicated region
      $region9: #{tpu_custom_call.1} parent=5 // pred_check
        _
      $region10: #{tpu_custom_call.1} parent=5 // pred_check_branch
        %119 = sbr.rel (%p116) target = $region12
      $region11: #{tpu_custom_call.1} parent=5 // pred_region
        %s120 = ssub.s32 %s12, 1
        // Predicated region
        $region13: #{tpu_custom_call.1} parent=11 // pred_check
          %p121 = pneg %p59
        $region14: #{tpu_custom_call.1} parent=11 // pred_check_branch
          %123 = sbr.rel (%p121) target = $region16
        $region15: #{tpu_custom_call.1} parent=11 // pred_region
          _
        $region16: #{tpu_custom_call.1} parent=11 // pred_fallthru
          _
        // Predicated region
        $region17: #{tpu_custom_call.1} parent=11 // pred_check
          %p124 = pneg %p80
        $region18: #{tpu_custom_call.1} parent=11 // pred_check_branch
          %126 = sbr.rel (%p124) target = $region20
        $region19: #{tpu_custom_call.1} parent=11 // pred_region
          _
        $region20: #{tpu_custom_call.1} parent=11 // pred_fallthru
          _
      $region12: #{tpu_custom_call.1} parent=5 // pred_fallthru
        _
      %p127 = scmp.lt.s32.totalorder %s12, 2
      // Predicated region
      $region21: #{tpu_custom_call.1} parent=5 // pred_check
        %p128 = pneg %p127
      $region22: #{tpu_custom_call.1} parent=5 // pred_check_branch
        %130 = sbr.rel (%p128) target = $region24
      $region23: #{tpu_custom_call.1} parent=5 // pred_region
        // Predicated region
        $region25: #{tpu_custom_call.1} parent=23 // pred_check
          %p131 = pneg %p32
        $region26: #{tpu_custom_call.1} parent=23 // pred_check_branch
          %133 = sbr.rel (%p131) target = $region28
        $region27: #{tpu_custom_call.1} parent=23 // pred_region
          %s134 = smul.u32 13, %s12
          %s135 = ssub.s32 25, %s134
          %p136 = scmp.lt.s32.totalorder %s135, 13
          %s137 = scalar_select %p136, %s135, 13
          %s138 = smul.u32 128, %s137
          %p139 = scmp.lt.s32.totalorder %s134, 24
          %s140 = scalar_select %p139, %s134, 24
          %s141 = smul.addr %s140, 8
          %s142 = scalar_lea.vmem %s0, %s141
          %s143 = smul.u32 13, %s12
          %s144 = ssub.s32 25, %s143
          %p145 = scmp.lt.s32.totalorder %s144, 13
          %s146 = scalar_select %p145, %s144, 13
          %s147 = smul.u32 128, %s146
        $region28: #{tpu_custom_call.1} parent=23 // pred_fallthru
          _
      $region24: #{tpu_custom_call.1} parent=5 // pred_fallthru
        _
      %p148 = scmp.le.s32.totalorder 1, %s12
      %p149 = scmp.lt.s32.totalorder %s12, 3
      %p150 = pnand %p148, %p149
      %p151 = pneg %p150
      // Predicated region
      $region29: #{tpu_custom_call.1} parent=5 // pred_check
        _
      $region30: #{tpu_custom_call.1} parent=5 // pred_check_branch
        %153 = sbr.rel (%p150) target = $region32
      $region31: #{tpu_custom_call.1} parent=5 // pred_region
        %s154 = ssub.s32 %s12, 1
        %s155 = smul.u32 13, %s17
        %s156 = ssub.s32 25, %s155
        %p157 = scmp.lt.s32.totalorder %s156, 13
        %s158 = scalar_select %p157, %s156, 13
        %s159 = smul.u32 128, %s158
        %p160 = scmp.lt.s32.totalorder %s155, 24
        %s161 = scalar_select %p160, %s155, 24
        %s162 = smul.addr %s161, 8
        %s163 = scalar_lea.vmem %s0, %s162
        %p164 = pneg %p38
        %p165 = pneg %p35
        %p166 = pneg %p59
        %p167 = pneg %p56
        %p168 = pneg %p80
        %p169 = pneg %p77
        %p170 = pneg %p106
        %p171 = pneg %p103
        %s172 = sand.u32 %s93, 1
        %s173 = scalar_lea.sflag [#allocation3], %s172
        %s174 = sand.u32 %s93, 1
        %s175 = smul.addr %s174, 104
        %s176 = scalar_lea.vmem [#allocation2], %s175
        %s177 = smul.u32 13, %s17
        %s178 = ssub.s32 25, %s177
        %p179 = scmp.lt.s32.totalorder %s178, 13
        %s180 = scalar_select %p179, %s178, 13
        %s181 = smul.u32 128, %s180
        %p182 = scmp.lt.s32.totalorder %s177, 24
        %s183 = scalar_select %p182, %s177, 24
        %s184 = smul.addr %s183, 8
        %s185 = scalar_lea.vmem %s0, %s184
        %s186 = smul.u32 13, %s17
        %s187 = ssub.s32 25, %s186
        %p188 = scmp.lt.s32.totalorder %s187, 13
        %s189 = scalar_select %p188, %s187, 13
        %s190 = smul.u32 128, %s189
        %s191 = smul.u32 13, %s17
        %s192 = ssub.s32 25, %s191
        %p193 = scmp.lt.s32.totalorder %s192, 13
        %s194 = scalar_select %p193, %s192, 13
        %s195 = smul.u32 128, %s194
        %v197 = vld [vmem:[%s185] sm:$0xff]
        %v198 = vld [vmem:[%s185 + $0x8] sm:$0xff]
        %v199 = vld [vmem:[%s185 + $0x10] sm:$0xff]
        %v200 = vld [vmem:[%s185 + $0x18] sm:$0xff]
        %v201 = vld [vmem:[%s185 + $0x20] sm:$0xff]
        %v202 = vld [vmem:[%s185 + $0x28] sm:$0xff]
        %v203 = vld [vmem:[%s185 + $0x30] sm:$0xff]
        %v204 = vld [vmem:[%s185 + $0x38] sm:$0xff]
        %v205 = vld [vmem:[%s185 + $0x40] sm:$0xff]
        %v206 = vld [vmem:[%s185 + $0x48] sm:$0xff]
        %v207 = vld [vmem:[%s185 + $0x50] sm:$0xff]
        %v208 = vld [vmem:[%s185 + $0x58] sm:$0xff]
        %v209 = vld [vmem:[%s185 + $0x60] sm:$0xff]
        %v210 = vlaneseq
        %v211 = vand.u32 %v210, 127
        %212 = vset.pattern.permute.xlu0 0
        %213 = vperm.xlu0 %212, %v197
        %v214 = vpop.permute.xlu0 %213
        %215 = vset.pattern.permute.xlu0 0
        %216 = vperm.xlu0 %215, %v198
        %v217 = vpop.permute.xlu0 %216
        %218 = vset.pattern.permute.xlu0 0
        %219 = vperm.xlu0 %218, %v199
        %v220 = vpop.permute.xlu0 %219
        %221 = vset.pattern.permute.xlu0 0
        %222 = vperm.xlu0 %221, %v200
        %v223 = vpop.permute.xlu0 %222
        %224 = vset.pattern.permute.xlu0 0
        %225 = vperm.xlu0 %224, %v201
        %v226 = vpop.permute.xlu0 %225
        %227 = vset.pattern.permute.xlu0 0
        %228 = vperm.xlu0 %227, %v202
        %v229 = vpop.permute.xlu0 %228
        %230 = vset.pattern.permute.xlu0 0
        %231 = vperm.xlu0 %230, %v203
        %v232 = vpop.permute.xlu0 %231
        %233 = vset.pattern.permute.xlu0 0
        %234 = vperm.xlu0 %233, %v204
        %v235 = vpop.permute.xlu0 %234
        %236 = vset.pattern.permute.xlu0 0
        %237 = vperm.xlu0 %236, %v205
        %v238 = vpop.permute.xlu0 %237
        %239 = vset.pattern.permute.xlu0 0
        %240 = vperm.xlu0 %239, %v206
        %v241 = vpop.permute.xlu0 %240
        %242 = vset.pattern.permute.xlu0 0
        %243 = vperm.xlu0 %242, %v207
        %v244 = vpop.permute.xlu0 %243
        %245 = vset.pattern.permute.xlu0 0
        %246 = vperm.xlu0 %245, %v208
        %v247 = vpop.permute.xlu0 %246
        %248 = vset.pattern.permute.xlu0 0
        %249 = vperm.xlu0 %248, %v209
        %v250 = vpop.permute.xlu0 %249
        %vm251 = vcmp.eq.s32.totalorder %v211, %v214
        %vm252 = vcmp.eq.s32.totalorder %v211, %v217
        %vm253 = vcmp.eq.s32.totalorder %v211, %v220
        %vm254 = vcmp.eq.s32.totalorder %v211, %v223
        %vm255 = vcmp.eq.s32.totalorder %v211, %v226
        %vm256 = vcmp.eq.s32.totalorder %v211, %v229
        %vm257 = vcmp.eq.s32.totalorder %v211, %v232
        %vm258 = vcmp.eq.s32.totalorder %v211, %v235
        %vm259 = vcmp.eq.s32.totalorder %v211, %v238
        %vm260 = vcmp.eq.s32.totalorder %v211, %v241
        %vm261 = vcmp.eq.s32.totalorder %v211, %v244
        %vm262 = vcmp.eq.s32.totalorder %v211, %v247
        %vm263 = vcmp.eq.s32.totalorder %v211, %v250
        %v264 = vsel %vm251, 1, 0
        %v265 = vsel %vm252, 1, 0
        %v266 = vsel %vm253, 1, 0
        %v267 = vsel %vm254, 1, 0
        %v268 = vsel %vm255, 1, 0
        %v269 = vsel %vm256, 1, 0
        %v270 = vsel %vm257, 1, 0
        %v271 = vsel %vm258, 1, 0
        %v272 = vsel %vm259, 1, 0
        %v273 = vsel %vm260, 1, 0
        %v274 = vsel %vm261, 1, 0
        %v275 = vsel %vm262, 1, 0
        %v276 = vsel %vm263, 1, 0
        %v277 = vcvt.s32.f32 %v264
        %v278 = vcvt.s32.f32 %v265
        %v279 = vcvt.s32.f32 %v266
        %v280 = vcvt.s32.f32 %v267
        %v281 = vcvt.s32.f32 %v268
        %v282 = vcvt.s32.f32 %v269
        %v283 = vcvt.s32.f32 %v270
        %v284 = vcvt.s32.f32 %v271
        %v285 = vcvt.s32.f32 %v272
        %v286 = vcvt.s32.f32 %v273
        %v287 = vcvt.s32.f32 %v274
        %v288 = vcvt.s32.f32 %v275
        %v289 = vcvt.s32.f32 %v276
        %v290 = vpack.c.bf16 %v278, %v277
        %v291 = vpack.c.bf16 %v280, %v279
        %v292 = vpack.c.bf16 %v282, %v281
        %v293 = vpack.c.bf16 %v284, %v283
        %v294 = vpack.c.bf16 %v286, %v285
        %v295 = vpack.c.bf16 %v288, %v287
        %v296 = vpack.c.bf16 %v289, %v289
        %v297 = vld [vmem:[%s1] sm:$0xf]
        %v298 = vld [vmem:[%s1 + $0x4] sm:$0xf]
        %v299 = vld [vmem:[%s1 + $0x8] sm:$0xf]
        %v300 = vld [vmem:[%s1 + $0xc] sm:$0xf]
        %v301 = vld [vmem:[%s2] sm:$0x1]
        %v303 = vlaneseq
        %v304 = vshrl.u32 %v303, 7
        %v305 = vsub.s32 0, %v304
        %v306 = vrot.slane %v301, %v305
        %v312 = vunpack.c.l.b16 %v297
        %v313 = vunpack.c.l.b16 %v298
        %v314 = vunpack.c.l.b16 %v299
        %v315 = vunpack.c.l.b16 %v300
        %v316 = vpack.c.b16 %v313, %v312
        %v317 = vpack.c.b16 %v315, %v314
        %vm320 = vcmask 261120
        %v322 = vsel %vm320, %v290, 0
        %v325 = vsel %vm320, %v291, 0
        %v328 = vsel %vm320, %v292, 0
        %v331 = vsel %vm320, %v293, 0
        %v334 = vsel %vm320, %v294, 0
        %v337 = vsel %vm320, %v295, 0
        %v340 = vsel %vm320, %v296, 0
        %342 = vmatprep.subr.bf16.mxu0 0
        %343 = vmatpush1.bf16.msra.mxu0 0
        %344 = vmatprep.subr.bf16.mxu0 0
        %345 = vmatpush1.bf16.msra.mxu0 0
        %346 = vmatprep.subr.bf16.mxu0 0
        %347 = vmatpush1.bf16.msra.mxu0 0
        %348 = vmatprep.subr.bf16.mxu0 0
        %349 = vmatpush1.bf16.msra.mxu0 0
        %350 = vmatprep.subr.bf16.mxu0 0
        %351 = vmatpush1.bf16.msra.mxu0 0
        %352 = vmatprep.subr.bf16.mxu0 0
        %353 = vmatpush1.bf16.msra.mxu0 0
        %354 = vmatprep.subr.bf16.mxu0 0
        %355 = vmatpush1.bf16.msra.mxu0 %v317
        %356 = vmatprep.subr.bf16.mxu0 0
        %357 = vmatpush1.bf16.msra.mxu0 %v316
        %358 = vmatprep.subr.bf16.mxu0 0
        %359 = vmatpush2.bf16.msra.mxu0 0
        %360 = vmatprep.subr.bf16.mxu0 0
        %361 = vmatpush2.bf16.msra.mxu0 0
        %362 = vmatprep.subr.bf16.mxu0 0
        %363 = vmatpush2.bf16.msra.mxu0 0
        %364 = vmatprep.subr.bf16.mxu0 0
        %365 = vmatpush2.bf16.msra.mxu0 0
        %366 = vmatprep.subr.bf16.mxu0 0
        %367 = vmatpush2.bf16.msra.mxu0 0
        %368 = vmatprep.subr.bf16.mxu0 0
        %369 = vmatpush2.bf16.msra.mxu0 0
        %370 = vmatprep.subr.bf16.mxu0 0
        %371 = vmatpush2.bf16.msra.mxu0 0
        %372 = vmatprep.subr.bf16.mxu0 0
        %373 = vmatpush2.bf16.msra.mxu0 0
        %374 = vmatprep.mubr.bf16.mxu0 0
        %375 = vmatmul.mubr.bf16.gmra.mxu0 %v322
        %v376 = vpop.f32.mrf.mxu0
        %v377 = vadd.f32 %v306, %v376
        %v378 = vpop.f32.mrf.mxu0
        %v379 = vpop.f32.mrf.mxu0
        %v380 = vadd.f32 %v306, %v379
        %v381 = vpop.f32.mrf.mxu0
        %382 = vmatprep.mubr.bf16.mxu0 0
        %383 = vmatmul.mubr.bf16.gmra.mxu0 %v325
        %v384 = vpop.f32.mrf.mxu0
        %v385 = vadd.f32 %v306, %v384
        %v386 = vpop.f32.mrf.mxu0
        %v387 = vpop.f32.mrf.mxu0
        %v388 = vadd.f32 %v306, %v387
        %v389 = vpop.f32.mrf.mxu0
        %390 = vmatprep.mubr.bf16.mxu0 0
        %391 = vmatmul.mubr.bf16.gmra.mxu0 %v328
        %v392 = vpop.f32.mrf.mxu0
        %v393 = vadd.f32 %v306, %v392
        %v394 = vpop.f32.mrf.mxu0
        %v395 = vpop.f32.mrf.mxu0
        %v396 = vadd.f32 %v306, %v395
        %v397 = vpop.f32.mrf.mxu0
        %398 = vmatprep.mubr.bf16.mxu0 0
        %399 = vmatmul.mubr.bf16.gmra.mxu0 %v331
        %v400 = vpop.f32.mrf.mxu0
        %v401 = vadd.f32 %v306, %v400
        %v402 = vpop.f32.mrf.mxu0
        %v403 = vpop.f32.mrf.mxu0
        %v404 = vadd.f32 %v306, %v403
        %v405 = vpop.f32.mrf.mxu0
        %406 = vmatprep.mubr.bf16.mxu0 0
        %407 = vmatmul.mubr.bf16.gmra.mxu0 %v334
        %v408 = vpop.f32.mrf.mxu0
        %v409 = vadd.f32 %v306, %v408
        %v410 = vpop.f32.mrf.mxu0
        %v411 = vpop.f32.mrf.mxu0
        %v412 = vadd.f32 %v306, %v411
        %v413 = vpop.f32.mrf.mxu0
        %414 = vmatprep.mubr.bf16.mxu0 0
        %415 = vmatmul.mubr.bf16.gmra.mxu0 %v337
        %v416 = vpop.f32.mrf.mxu0
        %v417 = vadd.f32 %v306, %v416
        %v418 = vpop.f32.mrf.mxu0
        %v419 = vpop.f32.mrf.mxu0
        %v420 = vadd.f32 %v306, %v419
        %v421 = vpop.f32.mrf.mxu0
        %422 = vmatprep.mubr.bf16.mxu0 0
        %423 = vmatmul.mubr.bf16.gmra.mxu0 %v340
        %v424 = vpop.f32.mrf.mxu0
        %v425 = vadd.f32 %v306, %v424
        %v426 = vpop.f32.mrf.mxu0
        %v427 = vpop.f32.mrf.mxu0
        %v428 = vpop.f32.mrf.mxu0
        %429 = vdwg.mxu0
        %v430 = vmax.f32 %v377, 0.0
        %v431 = vmax.f32 %v380, 0.0
        %v432 = vmax.f32 %v385, 0.0
        %v433 = vmax.f32 %v388, 0.0
        %v434 = vmax.f32 %v393, 0.0
        %v435 = vmax.f32 %v396, 0.0
        %v436 = vmax.f32 %v401, 0.0
        %v437 = vmax.f32 %v404, 0.0
        %v438 = vmax.f32 %v409, 0.0
        %v439 = vmax.f32 %v412, 0.0
        %v440 = vmax.f32 %v417, 0.0
        %v441 = vmax.f32 %v420, 0.0
        %v442 = vmax.f32 %v425, 0.0
        %443 = vst [vmem:[%s176] sm:$0xff] %v430
        %444 = vst [vmem:[%s176 + $0x8] sm:$0xff] %v431
        %445 = vst [vmem:[%s176 + $0x10] sm:$0xff] %v432
        %446 = vst [vmem:[%s176 + $0x18] sm:$0xff] %v433
        %447 = vst [vmem:[%s176 + $0x20] sm:$0xff] %v434
        %448 = vst [vmem:[%s176 + $0x28] sm:$0xff] %v435
        %449 = vst [vmem:[%s176 + $0x30] sm:$0xff] %v436
        %450 = vst [vmem:[%s176 + $0x38] sm:$0xff] %v437
        %451 = vst [vmem:[%s176 + $0x40] sm:$0xff] %v438
        %452 = vst [vmem:[%s176 + $0x48] sm:$0xff] %v439
        %453 = vst [vmem:[%s176 + $0x50] sm:$0xff] %v440
        %454 = vst [vmem:[%s176 + $0x58] sm:$0xff] %v441
        %455 = vst [vmem:[%s176 + $0x60] sm:$0xff] %v442
        %s456 = sand.u32 %s93, 1
        %s457 = scalar_lea.sflag [#allocation3], %s456
        %s458 = sand.u32 %s93, 1
        %s459 = smul.addr %s458, 104
        %s460 = scalar_lea.vmem [#allocation2], %s459
        // Predicated region
        $region33: #{tpu_custom_call.1} parent=31 // pred_check
          %p461 = pneg %p103
        $region34: #{tpu_custom_call.1} parent=31 // pred_check_branch
          %463 = sbr.rel (%p461) target = $region36
        $region35: #{tpu_custom_call.1} parent=31 // pred_region
          %s464 = smul.u32 13, %s17
          %s465 = ssub.s32 25, %s464
          %p466 = scmp.lt.s32.totalorder %s465, 13
          %s467 = scalar_select %p466, %s465, 13
          %s468 = smul.u32 128, %s467
          %s470 = ssub.s32 1664, %s468
          %471 = vsyncadd %s457, %s470
          %p472 = scmp.ne.s32.totalorder 0, %s468
          %s473 = smul.addr %s464, 128
          %s474 = scalar_lea.hbm %s3, %s473
          %s475 = smul.u32 8, %s467
          %s476 = sshll.u32 %s460, 4
          %s477 = int_to_ptr.vmem [resolvable:$true] %s476
          %s478 = sshll.u32 %s475, 4
          %482 = dma.vmem_to_hbm [thread:$0]  (%p472), %s477, %s478, %s474, %s457, 128, 128, 8
        $region36: #{tpu_custom_call.1} parent=31 // pred_fallthru
          _
      $region32: #{tpu_custom_call.1} parent=5 // pred_fallthru
        _
      %p483 = scmp.le.s32.totalorder 2, %s12
      // Predicated region
      $region37: #{tpu_custom_call.1} parent=5 // pred_check
        %p484 = pneg %p483
      $region38: #{tpu_custom_call.1} parent=5 // pred_check_branch
        %486 = sbr.rel (%p484) target = $region40
      $region39: #{tpu_custom_call.1} parent=5 // pred_region
        %s487 = ssub.s32 %s12, 2
        // Predicated region
        $region41: #{tpu_custom_call.1} parent=39 // pred_check
          %p488 = pneg %p109
        $region42: #{tpu_custom_call.1} parent=39 // pred_check_branch
          %490 = sbr.rel (%p488) target = $region44
        $region43: #{tpu_custom_call.1} parent=39 // pred_region
          %s491 = sand.u32 %s94, 1
          %s492 = scalar_lea.sflag [#allocation3], %s491
          %s493 = sand.u32 %s94, 1
          %s494 = smul.addr %s493, 104
          %s495 = scalar_lea.vmem [#allocation2], %s494
          %496 = dma.done %s492, 1664
        $region44: #{tpu_custom_call.1} parent=39 // pred_fallthru
          _
      $region40: #{tpu_custom_call.1} parent=5 // pred_fallthru
        _
    $region6: #{tpu_custom_call.1} parent=1 // loop_footer
      %s16 = sadd.s32 1, %s12
    $region7: #{tpu_custom_call.1} parent=1 // loop_footer_branch
      %11 = sbr.rel target = $region3
    $region8: #{tpu_custom_call.1} parent=1 // loop_exit
      _
    %497 = vsyncpa [#allocation3], 1
    %s498 = scalar_lea.sflag [#allocation3], 1
    %499 = vsyncpa %s498, 1

</llo_original>
